<compile_context>
chip_gen: v5e
topology: v5e:2x2
jax: 0.10.0
libtpu: 0.0.40
codegen_flags: <defaults>
</compile_context>

<pallas_src>
import jax
import jax.numpy as jnp
from jax.experimental import pallas as pl
from jax.experimental.pallas import tpu as pltpu


def _crop_w_kernel(x_ref, o_ref):
    # x_ref block: (B, TH, W); o_ref block: (B, TH, W_out).
    # The H crop is handled entirely by the output array extent (rows >= H_out
    # in the final row block are masked by Pallas on writeback), so only the
    # lane (W) dimension needs slicing here.
    o_ref[...] = x_ref[:, :, :o_ref.shape[2]]


def same_pad_2d(x: jax.Array, kernel_size: int,
                *, vmem_tile_budget_bytes: int = 12 * 1024 * 1024) -> jax.Array:
    """JAX/Pallas equivalent of SamePad2d(kernel_size)(x) for 4-D NCHW input."""
    assert x.ndim == 4, "SamePad2d expects a 4-D (N, C, H, W) input"
    remove = 1 if kernel_size % 2 == 0 else 0
    if remove == 0:
        # Identity: return x directly, no full-tensor copy.
        return x

    n, c, h, w = x.shape
    h_out, w_out = h - remove, w - remove
    if n * c == 0 or h_out <= 0 or w_out <= 0:
        # Degenerate (empty) result: no kernel launch needed.
        return x[:, :, :h_out, :w_out]

    nc = n * c
    # Free (contiguous) reshape: collapse batch and channel into one plane axis
    # so a single grid step can copy many planes.
    xf = x.reshape(nc, h, w)

    itemsize = jnp.dtype(x.dtype).itemsize
    # Double-buffered input + output tile bytes per plane-row.
    row_bytes = 2 * (w + w_out) * itemsize

    # Row block: multiple of 8 sublanes (BlockSpec constraint), covering all
    # output rows in one block when a plane fits the VMEM budget.
    th_full = -(-h_out // 8) * 8
    th_cap = max(8, (vmem_tile_budget_bytes // row_bytes) // 8 * 8)
    th = min(th_full, th_cap)

    # Plane block: as many planes per step as the budget allows.
    b = max(1, vmem_tile_budget_bytes // (th * row_bytes))
    b = min(b, nc)

    row_blocks = pl.cdiv(h_out, th)
    if nc >= 2 and row_blocks == 1:
        # Keep at least 2 grid steps so both v7x TensorCores get work.
        b = min(b, pl.cdiv(nc, 2))
    plane_blocks = pl.cdiv(nc, b)

    out = pl.pallas_call(
        _crop_w_kernel,
        out_shape=jax.ShapeDtypeStruct((nc, h_out, w_out), x.dtype),
        grid=(plane_blocks, row_blocks),
        in_specs=[pl.BlockSpec((b, th, w), lambda i, j: (i, j, 0))],
        out_specs=pl.BlockSpec((b, th, w_out), lambda i, j: (i, j, 0)),
        compiler_params=pltpu.CompilerParams(
            dimension_semantics=("parallel", "parallel"),
            # Explicit limit valid on all gens (<= 64 MiB physical on v7x) and
            # raises v5e's 16 MiB default so double-buffering fits comfortably.
            vmem_limit_bytes=32 * 1024 * 1024,
        ),
    )(xf)
    return out.reshape(n, c, h_out, w_out)


if __name__ == "__main__":
    key = jax.random.PRNGKey(0)
    # Small NCHW input consistent with the module's forward.
    x = jax.random.normal(key, (2, 4, 16, 16), dtype=jnp.float32)

    # Even kernel_size -> crop last row/col (goes through the Pallas kernel).
    y_even = jax.block_until_ready(same_pad_2d(x, kernel_size=2))
    assert y_even.shape == (2, 4, 15, 15)
    assert jnp.allclose(y_even, x[:, :, :-1, :-1])

    # Odd kernel_size -> identity (short-circuited in the wrapper).
    y_odd = jax.block_until_ready(same_pad_2d(x, kernel_size=3))
    assert y_odd.shape == x.shape
    assert jnp.allclose(y_odd, x)

    print("KERNEL_OK")
</pallas_src>

<mosaic_0001>
module attributes {stable_mosaic.version = 11 : i64} {
  func.func @_crop_w_kernel(%arg0: i32, %arg1: i32, %arg2: memref<4x16x16xf32, #tpu.memory_space<vmem>>, %arg3: memref<4x16x15xf32, #tpu.memory_space<vmem>>) attributes {dimension_semantics = [#tpu.dimension_semantics<parallel>, #tpu.dimension_semantics<parallel>], iteration_bounds = array<i64: 2, 1>, scalar_prefetch = 0 : i64, scratch_operands = 0 : i64, tpu.core_type = #tpu.core_type<tc>, window_params = [{transform_indices = @transform_0, window_bounds = array<i64: 4, 16, 16>}, {transform_indices = @transform_1, window_bounds = array<i64: 4, 16, 15>}]} {
    %c0 = arith.constant 0 : index
    %c0_0 = arith.constant 0 : index
    %c0_1 = arith.constant 0 : index
    %0 = vector.load %arg2[%c0, %c0_0, %c0_1] : memref<4x16x16xf32, #tpu.memory_space<vmem>>, vector<4x16x15xf32>
    %c0_2 = arith.constant 0 : index
    %c0_3 = arith.constant 0 : index
    %c0_4 = arith.constant 0 : index
    %1 = vector.load %arg3[%c0_2, %c0_3, %c0_4] : memref<4x16x15xf32, #tpu.memory_space<vmem>>, vector<4x16x15xf32>
    tpu.vector_store %arg3[%c0_2, %c0_3, %c0_4], %0 {strides = array<i32>} : memref<4x16x15xf32, #tpu.memory_space<vmem>>, vector<4x16x15xf32>,
    return
  }
  func.func @transform_0(%arg0: i32, %arg1: i32) -> (i32, i32, i32) {
    %c0_i32 = arith.constant 0 : i32
    %c0_i32_0 = arith.constant 0 : i32
    return %arg0, %arg1, %c0_i32 : i32, i32, i32
  }
  func.func @transform_1(%arg0: i32, %arg1: i32) -> (i32, i32, i32) {
    %c0_i32 = arith.constant 0 : i32
    %c0_i32_0 = arith.constant 0 : i32
    return %arg0, %arg1, %c0_i32 : i32, i32, i32
  }
}

</mosaic_0001>

<llo_original>
// kernel: tpu_custom_call.1
$region0: #{tpu_custom_call.1}
  #allocation0 [shape = 'u32[]', space=smem, size = 0x4, offset = 0x4, fixed_abs, tag = 'smem constant byte address 0x4 - core index']
  #allocation1 [shape = 'u32[72,128]{1,0:T(1,128)}', space=vmem, size = 0x9000, scoped, tag = 'internal scratch']
  %s0 = inlined_call_operand.hbm [shape: f32[8,16,16], index: 0, kind: input, shape index: {}]
  %s1 = inlined_call_operand.vmem [shape: f32[8,15,15], index: 1, kind: output, shape index: {}]
  %s2 = sld [smem:[#allocation0]]
  $region41: #{tpu_custom_call.1} parent=0
    _
  %s4 = ssub.s32 1, %s2
  %s5 = scalar_select 0, %s4, %s2
  $region1: #{tpu_custom_call.1} parent=0
    #allocation2 [shape = 'u8[65536]{0}', space=vmem, size = 0x10000, scoped, tag = 'input window, operand 0']
    #allocation3 [shape = 's32[2]{0}', space=sflag, size = 0x8, scoped, tag = 'scoped memory for tpu_custom_call.1']
    %6 = vsyncpa [#allocation3], 0
    %s7 = scalar_lea.sflag [#allocation3], 1
    %8 = vsyncpa %s7, 0
    loop: start=0, step=1, limit=4
    $region2: #{tpu_custom_call.1} parent=1 // loop_pre_header
      _
    $region3: #{tpu_custom_call.1} parent=1 // loop_header
      %s10 = sphi 0, %s14
      %p11 = scmp.ge.s32.totalorder %s10, 4
      %s17 = sphi 0, %s29
      %s18 = sphi 0, %s25
      %s19 = sphi 0, %s17
      %s20 = sphi 0, %s18
      %s21 = sphi 0, %s19
      %s22 = sphi 0, %s20
      %s34 = sphi 0, %s36
      %s37 = sphi 0, %s34
      %s38 = sphi 0, %s37
      %s54 = sphi 0, %s38
      %s62 = sphi 0, %s64
      %s65 = sphi 0, %s62
      %s66 = sphi 0, %s65
      %s82 = sphi 0, %s66
    $region4: #{tpu_custom_call.1} parent=1 // loop_header_branch
      %13 = sbr.rel (%p11) target = $region8
    $region5: #{tpu_custom_call.1} parent=1 // loop_body
      %s15 = ssub.s32 %s10, 1
      %s16 = ssub.s32 %s10, 2
      %s23 = sadd.s32 1, %s18
      %p24 = scmp.ge.s32.totalorder %s23, 1
      %s25 = scalar_select %p24, 0, %s23
      %s26 = sadd.s32 1, %s17
      %s27 = scalar_select %p24, %s26, %s17
      %p28 = scmp.ge.s32.totalorder %s27, 2
      %s29 = scalar_select %p28, 0, %s27
      %s30 = ssub.s32 %s17, %s29
      %s31 = ssub.s32 %s18, %s25
      %s32 = sor.u32 %s30, %s31
      %p33 = scmp.eq.s32.totalorder %s32, 0
      %s35 = sadd.s32 %s34, 1
      %s36 = scalar_select %p33, %s34, %s35
      %p39 = pneg %p33
      %p40 = scmp.eq.s32.totalorder %s10, 1
      %p41 = por %p39, %p40
      %p42 = scmp.ne.s32.totalorder %s34, %s37
      %p43 = scmp.eq.s32.totalorder %s10, 0
      %p44 = por %p42, %p43
      %p45 = scmp.ne.s32.totalorder %s34, %s37
      %p46 = scmp.eq.s32.totalorder %s15, 1
      %p47 = por %p45, %p46
      %p48 = scmp.ne.s32.totalorder %s37, %s38
      %p49 = scmp.eq.s32.totalorder %s15, 0
      %p50 = por %p48, %p49
      %p51 = scmp.ne.s32.totalorder %s37, %s38
      %p52 = scmp.eq.s32.totalorder %s16, 1
      %p53 = por %p51, %p52
      %p55 = scmp.ne.s32.totalorder %s38, %s54
      %p56 = scmp.eq.s32.totalorder %s16, 0
      %p57 = por %p55, %p56
      %s58 = ssub.s32 %s17, %s29
      %s59 = ssub.s32 %s18, %s25
      %s60 = sor.u32 %s58, %s59
      %p61 = scmp.eq.s32.totalorder %s60, 0
      %s63 = sadd.s32 %s62, 1
      %s64 = scalar_select %p61, %s62, %s63
      %p67 = pneg %p61
      %p68 = scmp.eq.s32.totalorder %s10, 1
      %p69 = por %p67, %p68
      %p70 = scmp.ne.s32.totalorder %s62, %s65
      %p71 = scmp.eq.s32.totalorder %s10, 0
      %p72 = por %p70, %p71
      %p73 = scmp.ne.s32.totalorder %s62, %s65
      %p74 = scmp.eq.s32.totalorder %s15, 1
      %p75 = por %p73, %p74
      %p76 = scmp.ne.s32.totalorder %s65, %s66
      %p77 = scmp.eq.s32.totalorder %s15, 0
      %p78 = por %p76, %p77
      %p79 = scmp.ne.s32.totalorder %s65, %s66
      %p80 = scmp.eq.s32.totalorder %s16, 1
      %p81 = por %p79, %p80
      %p83 = scmp.ne.s32.totalorder %s66, %s82
      %p84 = scmp.eq.s32.totalorder %s16, 0
      %p85 = por %p83, %p84
      %p86 = scmp.le.s32.totalorder 1, %s10
      %p87 = scmp.lt.s32.totalorder %s10, 3
      %p88 = pnand %p86, %p87
      %p89 = pneg %p88
      // Predicated region
      $region9: #{tpu_custom_call.1} parent=5 // pred_check
        _
      $region10: #{tpu_custom_call.1} parent=5 // pred_check_branch
        %91 = sbr.rel (%p88) target = $region12
      $region11: #{tpu_custom_call.1} parent=5 // pred_region
        %s92 = ssub.s32 %s10, 1
      $region12: #{tpu_custom_call.1} parent=5 // pred_fallthru
        _
      %p93 = scmp.lt.s32.totalorder %s10, 2
      // Predicated region
      $region13: #{tpu_custom_call.1} parent=5 // pred_check
        %p94 = pneg %p93
      $region14: #{tpu_custom_call.1} parent=5 // pred_check_branch
        %96 = sbr.rel (%p94) target = $region16
      $region15: #{tpu_custom_call.1} parent=5 // pred_region
        // Predicated region
        $region17: #{tpu_custom_call.1} parent=15 // pred_check
          %p97 = pneg %p44
        $region18: #{tpu_custom_call.1} parent=15 // pred_check_branch
          %99 = sbr.rel (%p97) target = $region20
        $region19: #{tpu_custom_call.1} parent=15 // pred_region
          %s100 = sand.u32 %s34, 1
          %s101 = scalar_lea.sflag [#allocation3], %s100
          %s102 = sand.u32 %s34, 1
          %s103 = smul.addr %s102, 64
          %s104 = scalar_lea.vmem [#allocation2], %s103
          %s105 = smul.u32 4, %s17
          %s106 = smul.u32 2, %s18
          %108 = vsyncadd %s101, 0
          %s109 = smul.addr %s105, 2
          %s110 = sadd.s32 %s106, %s109
          %s111 = smul.addr %s110, 8
          %s112 = scalar_lea.hbm %s0, %s111
          %s113 = sshll.u32 %s112, 4
          %s114 = int_to_ptr.hbm [resolvable:$true] %s113
          %s115 = sshll.u32 %s104, 4
          %s116 = int_to_ptr.vmem [resolvable:$true] %s115
          %121 = dma.hbm_to_vmem [thread:$0]  %s114, 1024, %s116, %s101, 128, 128, 8
        $region20: #{tpu_custom_call.1} parent=15 // pred_fallthru
          _
      $region16: #{tpu_custom_call.1} parent=5 // pred_fallthru
        _
      %p122 = scmp.le.s32.totalorder 1, %s10
      %p123 = scmp.lt.s32.totalorder %s10, 3
      %p124 = pnand %p122, %p123
      %p125 = pneg %p124
      // Predicated region
      $region21: #{tpu_custom_call.1} parent=5 // pred_check
        _
      $region22: #{tpu_custom_call.1} parent=5 // pred_check_branch
        %127 = sbr.rel (%p124) target = $region24
      $region23: #{tpu_custom_call.1} parent=5 // pred_region
        %s128 = ssub.s32 %s10, 1
        %s129 = sand.u32 %s37, 1
        %s130 = scalar_lea.sflag [#allocation3], %s129
        %s131 = sand.u32 %s37, 1
        %s132 = smul.addr %s131, 64
        %s133 = scalar_lea.vmem [#allocation2], %s132
        // Predicated region
        $region25: #{tpu_custom_call.1} parent=23 // pred_check
          %p134 = pneg %p50
        $region26: #{tpu_custom_call.1} parent=23 // pred_check_branch
          %136 = sbr.rel (%p134) target = $region28
        $region27: #{tpu_custom_call.1} parent=23 // pred_region
          %138 = dma.done %s130, 1024
        $region28: #{tpu_custom_call.1} parent=23 // pred_fallthru
          _
        %s139 = sand.u32 %s37, 1
        %s140 = scalar_lea.sflag [#allocation3], %s139
        %s141 = sand.u32 %s37, 1
        %s142 = smul.addr %s141, 64
        %s143 = scalar_lea.vmem [#allocation2], %s142
        %p144 = pneg %p50
        %p145 = pneg %p47
        %p146 = pneg %p78
        %p147 = pneg %p75
        %s148 = smul.u32 4, %s19
        %s149 = smul.u32 2, %s20
        %p150 = scmp.lt.s32.totalorder %s148, 7
        %s151 = scalar_select %p150, %s148, 7
        %p152 = scmp.lt.s32.totalorder %s149, 1
        %s153 = scalar_select %p152, %s149, 1
        %s154 = smul.addr %s151, 2
        %s155 = sadd.s32 %s153, %s154
        %s156 = smul.addr %s155, 8
        %s157 = scalar_lea.vmem %s1, %s156
        %s158 = smul.u32 4, %s19
        %s159 = smul.u32 2, %s20
        %s160 = smul.u32 4, %s19
        %s161 = smul.u32 2, %s20
        %p162 = scmp.lt.s32.totalorder %s160, 7
        %s163 = scalar_select %p162, %s160, 7
        %p164 = scmp.lt.s32.totalorder %s161, 1
        %s165 = scalar_select %p164, %s161, 1
        %s166 = smul.addr %s163, 2
        %s167 = sadd.s32 %s165, %s166
        %s168 = smul.addr %s167, 8
        %s169 = scalar_lea.vmem %s1, %s168
        %s170 = smul.u32 4, %s19
        %s171 = smul.u32 2, %s20
        %v172 = vld [vmem:[%s133] sm:$0xff]
        %v173 = vld [vmem:[%s133 + $0x8] sm:$0xff]
        %v174 = vld [vmem:[%s133 + $0x10] sm:$0xff]
        %v175 = vld [vmem:[%s133 + $0x18] sm:$0xff]
        %v176 = vld [vmem:[%s133 + $0x20] sm:$0xff]
        %v177 = vld [vmem:[%s133 + $0x28] sm:$0xff]
        %v178 = vld [vmem:[%s133 + $0x30] sm:$0xff]
        %v179 = vld [vmem:[%s133 + $0x38] sm:$0xff]
        %vm180 = vcmask 121856
        %181 = vst.msk [vmem:[%s169] sm:$0xff] %vm180, %v172
        %182 = vst.msk [vmem:[%s169 + $0x8] sm:$0xff] %vm180, %v173
        %183 = vst.msk [vmem:[%s169 + $0x10] sm:$0xff] %vm180, %v174
        %184 = vst.msk [vmem:[%s169 + $0x18] sm:$0xff] %vm180, %v175
        %185 = vst.msk [vmem:[%s169 + $0x20] sm:$0xff] %vm180, %v176
        %186 = vst.msk [vmem:[%s169 + $0x28] sm:$0xff] %vm180, %v177
        %187 = vst.msk [vmem:[%s169 + $0x30] sm:$0xff] %vm180, %v178
        %188 = vst.msk [vmem:[%s169 + $0x38] sm:$0xff] %vm180, %v179
        %s189 = smul.u32 4, %s19
        %s190 = smul.u32 2, %s20
        %p191 = scmp.lt.s32.totalorder %s189, 7
        %s192 = scalar_select %p191, %s189, 7
        %p193 = scmp.lt.s32.totalorder %s190, 1
        %s194 = scalar_select %p193, %s190, 1
        %s195 = smul.addr %s192, 2
        %s196 = sadd.s32 %s194, %s195
        %s197 = smul.addr %s196, 8
        %s198 = scalar_lea.vmem %s1, %s197
        // Predicated region
        $region29: #{tpu_custom_call.1} parent=23 // pred_check
          %p199 = pneg %p75
        $region30: #{tpu_custom_call.1} parent=23 // pred_check_branch
          %201 = sbr.rel (%p199) target = $region32
        $region31: #{tpu_custom_call.1} parent=23 // pred_region
          %s202 = smul.u32 4, %s19
          %s203 = smul.u32 2, %s20
        $region32: #{tpu_custom_call.1} parent=23 // pred_fallthru
          _
      $region24: #{tpu_custom_call.1} parent=5 // pred_fallthru
        _
      %p204 = scmp.le.s32.totalorder 2, %s10
      // Predicated region
      $region33: #{tpu_custom_call.1} parent=5 // pred_check
        %p205 = pneg %p204
      $region34: #{tpu_custom_call.1} parent=5 // pred_check_branch
        %207 = sbr.rel (%p205) target = $region36
      $region35: #{tpu_custom_call.1} parent=5 // pred_region
        %s208 = ssub.s32 %s10, 2
        // Predicated region
        $region37: #{tpu_custom_call.1} parent=35 // pred_check
          %p209 = pneg %p81
        $region38: #{tpu_custom_call.1} parent=35 // pred_check_branch
          %211 = sbr.rel (%p209) target = $region40
        $region39: #{tpu_custom_call.1} parent=35 // pred_region
          %s212 = smul.u32 4, %s21
          %s213 = smul.u32 2, %s22
          %p214 = scmp.lt.s32.totalorder %s212, 7
          %s215 = scalar_select %p214, %s212, 7
          %p216 = scmp.lt.s32.totalorder %s213, 1
          %s217 = scalar_select %p216, %s213, 1
          %s218 = smul.addr %s215, 2
          %s219 = sadd.s32 %s217, %s218
          %s220 = smul.addr %s219, 8
          %s221 = scalar_lea.vmem %s1, %s220
        $region40: #{tpu_custom_call.1} parent=35 // pred_fallthru
          _
      $region36: #{tpu_custom_call.1} parent=5 // pred_fallthru
        _
    $region6: #{tpu_custom_call.1} parent=1 // loop_footer
      %s14 = sadd.s32 1, %s10
    $region7: #{tpu_custom_call.1} parent=1 // loop_footer_branch
      %9 = sbr.rel target = $region3
    $region8: #{tpu_custom_call.1} parent=1 // loop_exit
      _
    %222 = vsyncpa [#allocation3], 1
    %s223 = scalar_lea.sflag [#allocation3], 1
    %224 = vsyncpa %s223, 1

</llo_original>
